<compile_context>
chip_gen: v7x
topology: tpu7x:2x2x1
jax: 0.10.0
libtpu: 0.0.40
codegen_flags: <defaults>
</compile_context>

<pallas_src>
import jax
import jax.numpy as jnp
from jax.experimental import pallas as pl
from jax.experimental.pallas import tpu as pltpu


def _round_up(x: int, m: int) -> int:
    return ((x + m - 1) // m) * m


def _physical_vmem_bytes() -> int:
    try:
        return int(pltpu.get_tpu_info().vmem_capacity_bytes)
    except Exception:
        return 64 << 20  # conservative fallback (v7x-sized)


def _proj_logsoftmax_kernel(x_ref, w_ref, b_ref, o_ref, m_acc, l_acc):
    # x_ref: (tm, d_model) bf16, w_ref: (d_model, tv) bf16, b_ref: (1, tv) f32
    # o_ref: (tm, vocab_pad) -- VMEM-resident across the vocab grid axis
    # m_acc/l_acc: (tm, 1) f32 running max / running sum-of-exp
    j = pl.program_id(1)
    nv = pl.num_programs(1)
    tv = w_ref.shape[-1]

    @pl.when(j == 0)
    def _():
        m_acc[...] = jnp.full_like(m_acc, -jnp.inf)
        l_acc[...] = jnp.zeros_like(l_acc)

    # bf16 x bf16 -> f32 on the MXU; bias add in f32 (pad columns carry -inf bias).
    logits = jnp.dot(x_ref[...], w_ref[...],
                     preferred_element_type=jnp.float32) + b_ref[...]

    # Stage raw logits of this vocab tile into the resident output block.
    col = pl.multiple_of(j * tv, tv)
    o_ref[:, pl.ds(col, tv)] = logits.astype(o_ref.dtype)

    # Online max / logsumexp accumulation (flash-softmax style), all f32.
    # -inf logits on padded vocab columns contribute exp(...) == 0 here.
    m_old = m_acc[...]
    m_new = jnp.maximum(m_old, jnp.max(logits, axis=-1, keepdims=True))
    l_acc[...] = (l_acc[...] * jnp.exp(m_old - m_new)
                  + jnp.sum(jnp.exp(logits - m_new), axis=-1, keepdims=True))
    m_acc[...] = m_new

    # Finalize: shift the whole staged row by the global logsumexp.
    @pl.when(j == nv - 1)
    def _():
        lse = m_acc[...] + jnp.log(l_acc[...])
        o_ref[...] = (o_ref[...].astype(jnp.float32) - lse).astype(o_ref.dtype)


def prepare_projection_params(weight, bias, *, tv=1024):
    """One-time parameter prep (do this at model load, NOT per call).

    weight: (vocab, d_model) f32, bias: (vocab,) f32.
    Returns the transposed bf16 weight and f32 bias, padded along vocab to a
    multiple of the vocab tile; padded bias columns are -inf so they are masked
    out of the online max / logsumexp inside the kernel.
    """
    vocab, d_model = weight.shape
    tv = max(128, min((int(tv) // 128) * 128, _round_up(vocab, 128)))
    vocab_pad = _round_up(vocab, tv)

    w_t = weight.T.astype(jnp.bfloat16)                  # (d_model, vocab)
    b2d = bias.astype(jnp.float32).reshape(1, vocab)
    if vocab_pad != vocab:
        w_t = jnp.pad(w_t, ((0, 0), (0, vocab_pad - vocab)))
        b2d = jnp.pad(b2d, ((0, 0), (0, vocab_pad - vocab)),
                      constant_values=-jnp.inf)
    return {"w_t": w_t, "b2d": b2d, "vocab": vocab, "tv": tv}


def projection_apply(x, params, *, tm=256, out_dtype=jnp.bfloat16,
                     vmem_limit_bytes=None):
    """x: (batch, seq, d_model); params from prepare_projection_params.

    Returns log_softmax(x @ weight.T + bias, axis=-1), shape (batch, seq, vocab).
    """
    w_t, b2d = params["w_t"], params["b2d"]
    vocab, tv = params["vocab"], params["tv"]
    d_model, vocab_pad = w_t.shape
    batch, seq, _ = x.shape
    M = batch * seq
    out_isz = jnp.dtype(out_dtype).itemsize

    # Explicit per-generation VMEM budget (scoped default is only 16/32 MiB):
    # ~112 MiB on v5e/v6e (128 MiB phys), ~56 MiB on v7x (64 MiB phys).
    if vmem_limit_bytes is None:
        vmem_limit_bytes = int(_physical_vmem_bytes() * 0.875)
    budget = vmem_limit_bytes - (2 << 20)

    # Row tile: clamp to the row count, then shrink only if the VMEM plan misses.
    tm = max(8, min(tm, _round_up(M, 8)))

    def _fixed_bytes(tm_):
        return (2 * d_model * tv * 2      # double-buffered bf16 weight tiles
                + 2 * tm_ * d_model * 2   # double-buffered bf16 activation tiles
                + 2 * 1 * tv * 4          # double-buffered f32 bias tiles
                + 2 * tm_ * 4)            # m/l scratch

    out_buffers = 2
    while True:
        out_blk = tm * vocab_pad * out_isz
        if _fixed_bytes(tm) + 2 * out_blk <= budget:
            out_buffers = 2
            break
        if _fixed_bytes(tm) + out_blk <= budget:
            out_buffers = 1          # single-buffer the resident output (v7x)
            break
        if tm <= 8:
            out_buffers = 1          # best effort; see two-pass TODO above
            break
        tm = max(8, _round_up(tm // 2, 8))

    M_pad = _round_up(M, tm)
    x2d = x.reshape(M, d_model).astype(jnp.bfloat16)
    if M_pad != M:
        x2d = jnp.pad(x2d, ((0, M_pad - M), (0, 0)))

    grid = (M_pad // tm, vocab_pad // tv)

    out_spec_kwargs = {} if out_buffers == 2 else dict(pipeline_mode=pl.Buffered(1))
    out_spec = pl.BlockSpec((tm, vocab_pad), lambda i, j: (i, 0), **out_spec_kwargs)

    out2d = pl.pallas_call(
        _proj_logsoftmax_kernel,
        out_shape=jax.ShapeDtypeStruct((M_pad, vocab_pad), out_dtype),
        grid_spec=pltpu.PrefetchScalarGridSpec(
            num_scalar_prefetch=0,
            grid=grid,
            in_specs=[
                pl.BlockSpec((tm, d_model), lambda i, j: (i, 0)),   # activations
                pl.BlockSpec((d_model, tv), lambda i, j: (0, j)),   # weight tile
                pl.BlockSpec((1, tv),       lambda i, j: (0, j)),   # bias tile
            ],
            # Output block spans the full (padded) vocab row and stays
            # VMEM-resident across the vocab sweep (same block index for all j).
            out_specs=out_spec,
            scratch_shapes=[
                pltpu.VMEM((tm, 1), jnp.float32),   # running max
                pltpu.VMEM((tm, 1), jnp.float32),   # running sum of exp
            ],
        ),
        compiler_params=pltpu.CompilerParams(
            dimension_semantics=("parallel", "arbitrary"),
            vmem_limit_bytes=vmem_limit_bytes,
        ),
    )(x2d, w_t, b2d)

    out2d = out2d[:M, :vocab]
    return out2d.reshape(batch, seq, vocab)


def projection_layer(x, weight, bias, *, tv=1024, **kwargs):
    """Convenience one-shot path (prep + apply).  For real models call
    prepare_projection_params once at load time and reuse it across calls."""
    return projection_apply(x, prepare_projection_params(weight, bias, tv=tv),
                            **kwargs)


if __name__ == "__main__":
    # Small shapes consistent with the module's forward: (batch, seq, d_model).
    # vocab=500 (not a multiple of 128) exercises the pad + (-inf) mask path;
    # tv=256 gives two vocab tiles so the online logsumexp path is exercised.
    batch, seq, d_model, vocab = 2, 8, 64, 500

    key = jax.random.PRNGKey(0)
    kx, kw, kb = jax.random.split(key, 3)

    x = jax.random.normal(kx, (batch, seq, d_model), dtype=jnp.float32)
    bound = 1.0 / (d_model ** 0.5)
    weight = jax.random.uniform(kw, (vocab, d_model), jnp.float32,
                                minval=-bound, maxval=bound)
    bias = jax.random.uniform(kb, (vocab,), jnp.float32,
                              minval=-bound, maxval=bound)

    # One-time parameter prep (hoisted out of the per-call path).
    params = prepare_projection_params(weight, bias, tv=256)

    # Default fast path: bf16-staged output.
    out = projection_apply(x, params, tm=256)
    jax.block_until_ready(out)

    # f32-output path for tight numeric validation of the same kernel.
    out_f32 = projection_apply(x, params, tm=256, out_dtype=jnp.float32)
    jax.block_until_ready(out_f32)

    # Reference 1: same bf16 matmul inputs / f32 accumulation (tight tolerance).
    x2d = x.reshape(-1, d_model)
    logits_bf16 = jnp.dot(x2d.astype(jnp.bfloat16), weight.T.astype(jnp.bfloat16),
                          preferred_element_type=jnp.float32) + bias
    ref_bf16 = jax.nn.log_softmax(logits_bf16, axis=-1).reshape(batch, seq, vocab)
    # Reference 2: pure f32 math, matching the PyTorch module semantics (loose).
    ref_f32 = jax.nn.log_softmax(x @ weight.T + bias, axis=-1)

    assert out.shape == (batch, seq, vocab)
    assert out_f32.shape == (batch, seq, vocab)
    assert bool(jnp.allclose(out_f32, ref_bf16, atol=2e-3, rtol=2e-3)), \
        "f32-output mismatch vs bf16-matmul reference"
    assert bool(jnp.allclose(out.astype(jnp.float32), ref_bf16,
                             atol=6e-2, rtol=2e-2)), \
        "bf16-output mismatch vs bf16-matmul reference"
    assert bool(jnp.allclose(out_f32, ref_f32, atol=1e-1)), \
        "mismatch vs f32 reference"

    print("KERNEL_OK")
</pallas_src>

<mosaic_0001>
module attributes {stable_mosaic.version = 11 : i64} {
  func.func @_proj_logsoftmax_kernel(%arg0: i32, %arg1: i32, %arg2: memref<16x64xbf16, #tpu.memory_space<vmem>>, %arg3: memref<64x256xbf16, #tpu.memory_space<vmem>>, %arg4: memref<1x256xf32, #tpu.memory_space<vmem>>, %arg5: memref<16x512xbf16, #tpu.memory_space<vmem>>, %arg6: memref<16x1xf32, #tpu.memory_space<vmem>>, %arg7: memref<16x1xf32, #tpu.memory_space<vmem>>) attributes {dimension_semantics = [#tpu.dimension_semantics<parallel>, #tpu.dimension_semantics<arbitrary>], iteration_bounds = array<i64: 1, 2>, scalar_prefetch = 0 : i64, scratch_operands = 2 : i64, tpu.core_type = #tpu.core_type<tc>, window_params = [{transform_indices = @transform_0, window_bounds = array<i64: 16, 64>}, {transform_indices = @transform_1, window_bounds = array<i64: 64, 256>}, {transform_indices = @transform_2, window_bounds = array<i64: 1, 256>}, {transform_indices = @transform_3, window_bounds = array<i64: 16, 512>}]} {
    %c0_i32 = arith.constant 0 : i32
    %0 = arith.cmpi eq, %arg1, %c0_i32 : i32
    %1 = arith.extui %0 : i1 to i32
    %c0_i32_0 = arith.constant 0 : i32
    %2 = arith.cmpi ne, %1, %c0_i32_0 : i32
    scf.if %2 {
      %cst_18 = arith.constant 0xFF800000 : f32
      %33 = vector.broadcast %cst_18 : f32 to vector<16x1xf32>
      %c0_19 = arith.constant 0 : index
      %c0_20 = arith.constant 0 : index
      %34 = vector.load %arg6[%c0_19, %c0_20] : memref<16x1xf32, #tpu.memory_space<vmem>>, vector<16x1xf32>
      tpu.vector_store %arg6[%c0_19, %c0_20], %33 {strides = array<i32>} : memref<16x1xf32, #tpu.memory_space<vmem>>, vector<16x1xf32>,
      %cst_21 = arith.constant 0.000000e+00 : f32
      %35 = vector.broadcast %cst_21 : f32 to vector<16x1xf32>
      %c0_22 = arith.constant 0 : index
      %c0_23 = arith.constant 0 : index
      %36 = vector.load %arg7[%c0_22, %c0_23] : memref<16x1xf32, #tpu.memory_space<vmem>>, vector<16x1xf32>
      tpu.vector_store %arg7[%c0_22, %c0_23], %35 {strides = array<i32>} : memref<16x1xf32, #tpu.memory_space<vmem>>, vector<16x1xf32>,
    } else {
    }
    %c0 = arith.constant 0 : index
    %c0_1 = arith.constant 0 : index
    %3 = vector.load %arg2[%c0, %c0_1] : memref<16x64xbf16, #tpu.memory_space<vmem>>, vector<16x64xbf16>
    %c0_2 = arith.constant 0 : index
    %c0_3 = arith.constant 0 : index
    %4 = vector.load %arg3[%c0_2, %c0_3] : memref<64x256xbf16, #tpu.memory_space<vmem>>, vector<64x256xbf16>
    %cst = arith.constant dense<0.000000e+00> : vector<16x256xf32>
    %5 = tpu.matmul %3, %4, %cst {dimension_numbers = #tpu.dot_dimension_numbers<[1], [0], [0], [1], [0, 0, 1, 1], [], []>} : vector<16x64xbf16>, vector<64x256xbf16>, vector<16x256xf32> -> vector<16x256xf32>
    %c0_4 = arith.constant 0 : index
    %c0_5 = arith.constant 0 : index
    %6 = vector.load %arg4[%c0_4, %c0_5] : memref<1x256xf32, #tpu.memory_space<vmem>>, vector<1x256xf32>
    %7 = vector.broadcast %6 : vector<1x256xf32> to vector<16x256xf32>
    %8 = arith.addf %5, %7 : vector<16x256xf32>
    %c256_i32 = arith.constant 256 : i32
    %9 = arith.muli %arg1, %c256_i32 : i32
    %10 = tpu.assume_multiple %9, 256 : i32
    %11 = arith.truncf %8 : vector<16x256xf32> to vector<16x256xbf16>
    %c0_6 = arith.constant 0 : index
    %12 = arith.index_cast %10 : i32 to index
    %13 = vector.load %arg5[%c0_6, %12] : memref<16x512xbf16, #tpu.memory_space<vmem>>, vector<16x256xbf16>
    tpu.vector_store %arg5[%c0_6, %12], %11 {strides = array<i32>} : memref<16x512xbf16, #tpu.memory_space<vmem>>, vector<16x256xbf16>,
    %c0_7 = arith.constant 0 : index
    %c0_8 = arith.constant 0 : index
    %14 = vector.load %arg6[%c0_7, %c0_8] : memref<16x1xf32, #tpu.memory_space<vmem>>, vector<16x1xf32>
    %cst_9 = arith.constant dense<0xFF800000> : vector<16xf32>
    %15 = vector.multi_reduction <maximumf>, %8, %cst_9 [1] : vector<16x256xf32> to vector<16xf32>
    %16 = vector.shape_cast %15 : vector<16xf32> to vector<16x1xf32>
    %17 = arith.maximumf %14, %16 : vector<16x1xf32>
    %c0_10 = arith.constant 0 : index
    %c0_11 = arith.constant 0 : index
    %18 = vector.load %arg7[%c0_10, %c0_11] : memref<16x1xf32, #tpu.memory_space<vmem>>, vector<16x1xf32>
    %19 = arith.subf %14, %17 : vector<16x1xf32>
    %20 = math.exp %19 : vector<16x1xf32>
    %21 = arith.mulf %18, %20 : vector<16x1xf32>
    %22 = vector.broadcast %17 : vector<16x1xf32> to vector<16x256xf32>
    %23 = arith.subf %8, %22 : vector<16x256xf32>
    %24 = math.exp %23 : vector<16x256xf32>
    %cst_12 = arith.constant dense<0.000000e+00> : vector<16xf32>
    %25 = vector.multi_reduction <add>, %24, %cst_12 [1] : vector<16x256xf32> to vector<16xf32>
    %26 = vector.shape_cast %25 : vector<16xf32> to vector<16x1xf32>
    %27 = arith.addf %21, %26 : vector<16x1xf32>
    %c0_13 = arith.constant 0 : index
    %c0_14 = arith.constant 0 : index
    %28 = vector.load %arg7[%c0_13, %c0_14] : memref<16x1xf32, #tpu.memory_space<vmem>>, vector<16x1xf32>
    tpu.vector_store %arg7[%c0_13, %c0_14], %27 {strides = array<i32>} : memref<16x1xf32, #tpu.memory_space<vmem>>, vector<16x1xf32>,
    %c0_15 = arith.constant 0 : index
    %c0_16 = arith.constant 0 : index
    %29 = vector.load %arg6[%c0_15, %c0_16] : memref<16x1xf32, #tpu.memory_space<vmem>>, vector<16x1xf32>
    tpu.vector_store %arg6[%c0_15, %c0_16], %17 {strides = array<i32>} : memref<16x1xf32, #tpu.memory_space<vmem>>, vector<16x1xf32>,
    %c1_i32 = arith.constant 1 : i32
    %30 = arith.cmpi eq, %arg1, %c1_i32 : i32
    %31 = arith.extui %30 : i1 to i32
    %c0_i32_17 = arith.constant 0 : i32
    %32 = arith.cmpi ne, %31, %c0_i32_17 : i32
    scf.if %32 {
      %c0_18 = arith.constant 0 : index
      %c0_19 = arith.constant 0 : index
      %33 = vector.load %arg6[%c0_18, %c0_19] : memref<16x1xf32, #tpu.memory_space<vmem>>, vector<16x1xf32>
      %c0_20 = arith.constant 0 : index
      %c0_21 = arith.constant 0 : index
      %34 = vector.load %arg7[%c0_20, %c0_21] : memref<16x1xf32, #tpu.memory_space<vmem>>, vector<16x1xf32>
      %35 = math.log %34 : vector<16x1xf32>
      %36 = arith.addf %33, %35 : vector<16x1xf32>
      %c0_22 = arith.constant 0 : index
      %c0_23 = arith.constant 0 : index
      %37 = vector.load %arg5[%c0_22, %c0_23] : memref<16x512xbf16, #tpu.memory_space<vmem>>, vector<16x512xbf16>
      %38 = arith.extf %37 : vector<16x512xbf16> to vector<16x512xf32>
      %39 = vector.broadcast %36 : vector<16x1xf32> to vector<16x512xf32>
      %40 = arith.subf %38, %39 : vector<16x512xf32>
      %41 = arith.truncf %40 : vector<16x512xf32> to vector<16x512xbf16>
      %c0_24 = arith.constant 0 : index
      %c0_25 = arith.constant 0 : index
      %42 = vector.load %arg5[%c0_24, %c0_25] : memref<16x512xbf16, #tpu.memory_space<vmem>>, vector<16x512xbf16>
      tpu.vector_store %arg5[%c0_24, %c0_25], %41 {strides = array<i32>} : memref<16x512xbf16, #tpu.memory_space<vmem>>, vector<16x512xbf16>,
    } else {
    }
    return
  }
  func.func @transform_0(%arg0: i32, %arg1: i32) -> (i32, i32) {
    %c0_i32 = arith.constant 0 : i32
    %c0_i32_0 = arith.constant 0 : i32
    return %arg0, %c0_i32 : i32, i32
  }
  func.func @transform_1(%arg0: i32, %arg1: i32) -> (i32, i32) {
    %c0_i32 = arith.constant 0 : i32
    %c0_i32_0 = arith.constant 0 : i32
    return %c0_i32, %arg1 : i32, i32
  }
  func.func @transform_2(%arg0: i32, %arg1: i32) -> (i32, i32) {
    %c0_i32 = arith.constant 0 : i32
    %c0_i32_0 = arith.constant 0 : i32
    return %c0_i32, %arg1 : i32, i32
  }
  func.func @transform_3(%arg0: i32, %arg1: i32) -> (i32, i32) {
    %c0_i32 = arith.constant 0 : i32
    %c0_i32_0 = arith.constant 0 : i32
    return %arg0, %c0_i32 : i32, i32
  }
}

</mosaic_0001>

<llo_original>
// kernel: tpu_custom_call.1
$region0: #{tpu_custom_call.1}
  #allocation0 [shape = 'u32[]', space=smem, size = 0x4, offset = 0x4, fixed_abs, tag = 'smem constant byte address 0x4 - core index']
  #allocation1 [shape = 'u32[144,128]{1,0:T(1,128)}', space=vmem, size = 0x12000, scoped, tag = 'internal scratch']
  #allocation2 [shape = 'f32[16,1]{1,0:T(8,128)}', space=vmem, size = 0x2000, scoped, tag = 'scratch operand']
  #allocation3 [shape = 'f32[16,1]{1,0:T(8,128)}', space=vmem, size = 0x2000, scoped, tag = 'scratch operand']
  %s0 = inlined_call_operand.hbm [shape: bf16[16,64], index: 0, kind: input, shape index: {}]
  %s1 = inlined_call_operand.hbm [shape: bf16[64,512], index: 1, kind: input, shape index: {}]
  %s2 = inlined_call_operand.vmem [shape: f32[1,512], index: 2, kind: input, shape index: {}]
  %s3 = inlined_call_operand.hbm [shape: bf16[16,512], index: 3, kind: output, shape index: {}]
  %s4 = sld [smem:[#allocation0]]
  $region61: #{tpu_custom_call.1} parent=0
    _
  %s6 = ssub.s32 1, %s4
  %s7 = scalar_select 0, %s6, %s4
  $region1: #{tpu_custom_call.1} parent=0
    #allocation4 [shape = 'u8[4096]{0}', space=vmem, size = 0x1000, scoped, tag = 'input window, operand 0, single buffered']
    #allocation5 [shape = 's32[2]{0}', space=sflag, size = 0x8, scoped, tag = 'scoped memory for tpu_custom_call.1']
    #allocation6 [shape = 's32[2]{0}', space=sflag, size = 0x8, scoped, tag = 'scoped memory for tpu_custom_call.1']
    #allocation7 [shape = 'u8[65536]{0}', space=vmem, size = 0x10000, scoped, tag = 'input window, operand 1']
    #allocation8 [shape = 's32[2]{0}', space=sflag, size = 0x8, scoped, tag = 'scoped memory for tpu_custom_call.1']
    #allocation9 [shape = 'u8[16384]{0}', space=vmem, size = 0x4000, scoped, tag = 'output window, operand 0, single buffered']
    %8 = vsyncpa [#allocation5], 0
    %9 = vsyncpa [#allocation8], 0
    %s10 = scalar_lea.sflag [#allocation8], 1
    %11 = vsyncpa %s10, 0
    %12 = vsyncpa [#allocation6], 0
    loop: start=0, step=1, limit=4
    $region2: #{tpu_custom_call.1} parent=1 // loop_pre_header
      _
    $region3: #{tpu_custom_call.1} parent=1 // loop_header
      %s14 = sphi 0, %s18
      %p15 = scmp.ge.s32.totalorder %s14, 4
      %s21 = sphi 0, %s33
      %s22 = sphi 0, %s29
      %s23 = sphi 0, %s21
      %s24 = sphi 0, %s22
      %s25 = sphi 0, %s23
      %s26 = sphi 0, %s24
      %s36 = sphi 0, %s38
      %s39 = sphi 0, %s36
      %s40 = sphi 0, %s39
      %s56 = sphi 0, %s40
      %s62 = sphi 0, %s64
      %s65 = sphi 0, %s62
      %s66 = sphi 0, %s65
      %s82 = sphi 0, %s66
      %s88 = sphi 0, %s90
      %s91 = sphi 0, %s88
      %s92 = sphi 0, %s91
      %s108 = sphi 0, %s92
      %s114 = sphi 0, %s116
      %s117 = sphi 0, %s114
      %s118 = sphi 0, %s117
      %s134 = sphi 0, %s118
    $region4: #{tpu_custom_call.1} parent=1 // loop_header_branch
      %17 = sbr.rel (%p15) target = $region8
    $region5: #{tpu_custom_call.1} parent=1 // loop_body
      %s19 = ssub.s32 %s14, 1
      %s20 = ssub.s32 %s14, 2
      %s27 = sadd.s32 1, %s22
      %p28 = scmp.ge.s32.totalorder %s27, 2
      %s29 = scalar_select %p28, 0, %s27
      %s30 = sadd.s32 1, %s21
      %s31 = scalar_select %p28, %s30, %s21
      %p32 = scmp.ge.s32.totalorder %s31, 1
      %s33 = scalar_select %p32, 0, %s31
      %s34 = ssub.s32 %s21, %s33
      %p35 = scmp.eq.s32.totalorder %s34, 0
      %s37 = sadd.s32 %s36, 1
      %s38 = scalar_select %p35, %s36, %s37
      %p41 = pneg %p35
      %p42 = scmp.eq.s32.totalorder %s14, 1
      %p43 = por %p41, %p42
      %p44 = scmp.ne.s32.totalorder %s36, %s39
      %p45 = scmp.eq.s32.totalorder %s14, 0
      %p46 = por %p44, %p45
      %p47 = scmp.ne.s32.totalorder %s36, %s39
      %p48 = scmp.eq.s32.totalorder %s19, 1
      %p49 = por %p47, %p48
      %p50 = scmp.ne.s32.totalorder %s39, %s40
      %p51 = scmp.eq.s32.totalorder %s19, 0
      %p52 = por %p50, %p51
      %p53 = scmp.ne.s32.totalorder %s39, %s40
      %p54 = scmp.eq.s32.totalorder %s20, 1
      %p55 = por %p53, %p54
      %p57 = scmp.ne.s32.totalorder %s40, %s56
      %p58 = scmp.eq.s32.totalorder %s20, 0
      %p59 = por %p57, %p58
      %s60 = ssub.s32 %s22, %s29
      %p61 = scmp.eq.s32.totalorder %s60, 0
      %s63 = sadd.s32 %s62, 1
      %s64 = scalar_select %p61, %s62, %s63
      %p67 = pneg %p61
      %p68 = scmp.eq.s32.totalorder %s14, 1
      %p69 = por %p67, %p68
      %p70 = scmp.ne.s32.totalorder %s62, %s65
      %p71 = scmp.eq.s32.totalorder %s14, 0
      %p72 = por %p70, %p71
      %p73 = scmp.ne.s32.totalorder %s62, %s65
      %p74 = scmp.eq.s32.totalorder %s19, 1
      %p75 = por %p73, %p74
      %p76 = scmp.ne.s32.totalorder %s65, %s66
      %p77 = scmp.eq.s32.totalorder %s19, 0
      %p78 = por %p76, %p77
      %p79 = scmp.ne.s32.totalorder %s65, %s66
      %p80 = scmp.eq.s32.totalorder %s20, 1
      %p81 = por %p79, %p80
      %p83 = scmp.ne.s32.totalorder %s66, %s82
      %p84 = scmp.eq.s32.totalorder %s20, 0
      %p85 = por %p83, %p84
      %s86 = ssub.s32 %s22, %s29
      %p87 = scmp.eq.s32.totalorder %s86, 0
      %s89 = sadd.s32 %s88, 1
      %s90 = scalar_select %p87, %s88, %s89
      %p93 = pneg %p87
      %p94 = scmp.eq.s32.totalorder %s14, 1
      %p95 = por %p93, %p94
      %p96 = scmp.ne.s32.totalorder %s88, %s91
      %p97 = scmp.eq.s32.totalorder %s14, 0
      %p98 = por %p96, %p97
      %p99 = scmp.ne.s32.totalorder %s88, %s91
      %p100 = scmp.eq.s32.totalorder %s19, 1
      %p101 = por %p99, %p100
      %p102 = scmp.ne.s32.totalorder %s91, %s92
      %p103 = scmp.eq.s32.totalorder %s19, 0
      %p104 = por %p102, %p103
      %p105 = scmp.ne.s32.totalorder %s91, %s92
      %p106 = scmp.eq.s32.totalorder %s20, 1
      %p107 = por %p105, %p106
      %p109 = scmp.ne.s32.totalorder %s92, %s108
      %p110 = scmp.eq.s32.totalorder %s20, 0
      %p111 = por %p109, %p110
      %s112 = ssub.s32 %s21, %s33
      %p113 = scmp.eq.s32.totalorder %s112, 0
      %s115 = sadd.s32 %s114, 1
      %s116 = scalar_select %p113, %s114, %s115
      %p119 = pneg %p113
      %p120 = scmp.eq.s32.totalorder %s14, 1
      %p121 = por %p119, %p120
      %p122 = scmp.ne.s32.totalorder %s114, %s117
      %p123 = scmp.eq.s32.totalorder %s14, 0
      %p124 = por %p122, %p123
      %p125 = scmp.ne.s32.totalorder %s114, %s117
      %p126 = scmp.eq.s32.totalorder %s19, 1
      %p127 = por %p125, %p126
      %p128 = scmp.ne.s32.totalorder %s117, %s118
      %p129 = scmp.eq.s32.totalorder %s19, 0
      %p130 = por %p128, %p129
      %p131 = scmp.ne.s32.totalorder %s117, %s118
      %p132 = scmp.eq.s32.totalorder %s20, 1
      %p133 = por %p131, %p132
      %p135 = scmp.ne.s32.totalorder %s118, %s134
      %p136 = scmp.eq.s32.totalorder %s20, 0
      %p137 = por %p135, %p136
      %p138 = scmp.le.s32.totalorder 1, %s14
      %p139 = scmp.lt.s32.totalorder %s14, 3
      %p140 = pnand %p138, %p139
      %p141 = pneg %p140
      // Predicated region
      $region9: #{tpu_custom_call.1} parent=5 // pred_check
        _
      $region10: #{tpu_custom_call.1} parent=5 // pred_check_branch
        %143 = sbr.rel (%p140) target = $region12
      $region11: #{tpu_custom_call.1} parent=5 // pred_region
        %s144 = ssub.s32 %s14, 1
        // Predicated region
        $region13: #{tpu_custom_call.1} parent=11 // pred_check
          %p145 = pneg %p52
        $region14: #{tpu_custom_call.1} parent=11 // pred_check_branch
          %147 = sbr.rel (%p145) target = $region16
        $region15: #{tpu_custom_call.1} parent=11 // pred_region
          %s148 = smul.u32 2, %s23
          %s150 = ssub.s32 128, 128
          %151 = vsyncadd [#allocation5], %s150
          %s152 = smul.addr %s148, 64
          %s153 = scalar_lea.hbm %s0, %s152
          %s154 = sshll.u32 [#allocation4], 4
          %s155 = int_to_ptr.vmem [resolvable:$true] %s154
          %160 = dma.hbm_to_vmem [thread:$0]  %s153, 128, %s155, [#allocation5], 64, 64, 4
        $region16: #{tpu_custom_call.1} parent=11 // pred_fallthru
          _
      $region12: #{tpu_custom_call.1} parent=5 // pred_fallthru
        _
      %p161 = scmp.lt.s32.totalorder %s14, 2
      // Predicated region
      $region17: #{tpu_custom_call.1} parent=5 // pred_check
        %p162 = pneg %p161
      $region18: #{tpu_custom_call.1} parent=5 // pred_check_branch
        %164 = sbr.rel (%p162) target = $region20
      $region19: #{tpu_custom_call.1} parent=5 // pred_region
        // Predicated region
        $region21: #{tpu_custom_call.1} parent=19 // pred_check
          %p165 = pneg %p72
        $region22: #{tpu_custom_call.1} parent=19 // pred_check_branch
          %167 = sbr.rel (%p165) target = $region24
        $region23: #{tpu_custom_call.1} parent=19 // pred_region
          %s168 = sand.u32 %s62, 1
          %s169 = scalar_lea.sflag [#allocation8], %s168
          %s170 = sand.u32 %s62, 1
          %s171 = smul.addr %s170, 64
          %s172 = scalar_lea.vmem [#allocation7], %s171
          %s173 = smul.u32 2, %s22
          %s175 = ssub.s32 1024, 1024
          %176 = vsyncadd %s169, %s175
          %s177 = smul.addr %s173, 64
          %s178 = scalar_lea.hbm %s1, %s177
          %s179 = sshll.u32 %s172, 4
          %s180 = int_to_ptr.vmem [resolvable:$true] %s179
          %185 = dma.hbm_to_vmem [thread:$0]  %s178, 1024, %s180, %s169, 256, 128, 8
        $region24: #{tpu_custom_call.1} parent=19 // pred_fallthru
          _
        // Predicated region
        $region25: #{tpu_custom_call.1} parent=19 // pred_check
          %p186 = pneg %p98
        $region26: #{tpu_custom_call.1} parent=19 // pred_check_branch
          %188 = sbr.rel (%p186) target = $region28
        $region27: #{tpu_custom_call.1} parent=19 // pred_region
          %s189 = smul.u32 2, %s22
          %p190 = scmp.lt.s32.totalorder %s189, 3
          %s191 = scalar_select %p190, %s189, 3
          %s192 = scalar_lea.vmem %s2, %s191
          %s193 = smul.u32 2, %s22
        $region28: #{tpu_custom_call.1} parent=19 // pred_fallthru
          _
      $region20: #{tpu_custom_call.1} parent=5 // pred_fallthru
        _
      %p194 = scmp.le.s32.totalorder 1, %s14
      %p195 = scmp.lt.s32.totalorder %s14, 3
      %p196 = pnand %p194, %p195
      %p197 = pneg %p196
      // Predicated region
      $region29: #{tpu_custom_call.1} parent=5 // pred_check
        _
      $region30: #{tpu_custom_call.1} parent=5 // pred_check_branch
        %199 = sbr.rel (%p196) target = $region32
      $region31: #{tpu_custom_call.1} parent=5 // pred_region
        %s200 = ssub.s32 %s14, 1
        // Predicated region
        $region33: #{tpu_custom_call.1} parent=31 // pred_check
          %p201 = pneg %p52
        $region34: #{tpu_custom_call.1} parent=31 // pred_check_branch
          %203 = sbr.rel (%p201) target = $region36
        $region35: #{tpu_custom_call.1} parent=31 // pred_region
          %204 = dma.done [#allocation5], 128
        $region36: #{tpu_custom_call.1} parent=31 // pred_fallthru
          _
        %s205 = sand.u32 %s65, 1
        %s206 = scalar_lea.sflag [#allocation8], %s205
        %s207 = sand.u32 %s65, 1
        %s208 = smul.addr %s207, 64
        %s209 = scalar_lea.vmem [#allocation7], %s208
        // Predicated region
        $region37: #{tpu_custom_call.1} parent=31 // pred_check
          %p210 = pneg %p78
        $region38: #{tpu_custom_call.1} parent=31 // pred_check_branch
          %212 = sbr.rel (%p210) target = $region40
        $region39: #{tpu_custom_call.1} parent=31 // pred_region
          %213 = dma.done %s206, 1024
        $region40: #{tpu_custom_call.1} parent=31 // pred_fallthru
          _
        %p214 = pneg %p52
        %p215 = pneg %p49
        %s216 = sand.u32 %s65, 1
        %s217 = scalar_lea.sflag [#allocation8], %s216
        %s218 = sand.u32 %s65, 1
        %s219 = smul.addr %s218, 64
        %s220 = scalar_lea.vmem [#allocation7], %s219
        %p221 = pneg %p78
        %p222 = pneg %p75
        %s223 = smul.u32 2, %s24
        %p224 = scmp.lt.s32.totalorder %s223, 3
        %s225 = scalar_select %p224, %s223, 3
        %s226 = scalar_lea.vmem %s2, %s225
        %p227 = pneg %p104
        %p228 = pneg %p101
        %p229 = pneg %p130
        %p230 = pneg %p127
        %s231 = smul.u32 2, %s23
        %s232 = smul.u32 2, %s24
        %s233 = smul.u32 2, %s24
        %p234 = scmp.lt.s32.totalorder %s233, 3
        %s235 = scalar_select %p234, %s233, 3
        %s236 = scalar_lea.vmem %s2, %s235
        %s237 = smul.u32 2, %s24
        %s238 = smul.u32 2, %s23
        %p240 = scmp.eq.s32.totalorder %s24, 0
        // Predicated region
        $region41: #{tpu_custom_call.1} parent=31 // pred_check
          %p241 = pneg %p240
        $region42: #{tpu_custom_call.1} parent=31 // pred_check_branch
          %243 = sbr.rel (%p241) target = $region44
        $region43: #{tpu_custom_call.1} parent=31 // pred_region
          %vm244 = vcmask 7168
          %245 = vst.msk [vmem:[#allocation2] sm:$0xff] %vm244, -inf
          %246 = vst.msk [vmem:[#allocation2 + $0x8] sm:$0xff] %vm244, -inf
          %247 = vst.msk [vmem:[#allocation3] sm:$0xff] %vm244, 0.0
          %248 = vst.msk [vmem:[#allocation3 + $0x8] sm:$0xff] %vm244, 0.0
        $region44: #{tpu_custom_call.1} parent=31 // pred_fallthru
          _
        %v249 = vld [vmem:[#allocation4] sm:$0xf]
        %v250 = vld [vmem:[#allocation4 + $0x4] sm:$0xf]
        %v251 = vld [vmem:[%s209] sm:$0xff]
        %v252 = vld [vmem:[%s209 + $0x8] sm:$0xff]
        %v253 = vld [vmem:[%s209 + $0x10] sm:$0xff]
        %v254 = vld [vmem:[%s209 + $0x18] sm:$0xff]
        %v255 = vld [vmem:[%s209 + $0x20] sm:$0xff]
        %v256 = vld [vmem:[%s209 + $0x28] sm:$0xff]
        %v257 = vld [vmem:[%s209 + $0x30] sm:$0xff]
        %v258 = vld [vmem:[%s209 + $0x38] sm:$0xff]
        %v259 = vld [vmem:[%s236] sm:$0x3]
        %v261 = vlaneseq
        %v262 = vshrl.u32 %v261, 7
        %v263 = vsub.s32 0, %v262
        %v264 = vrot.slane %v259, %v263
        %v265 = vlaneseq
        %v266 = vshrl.u32 %v265, 7
        %v267 = vsub.s32 1, %v266
        %v268 = vrot.slane %v259, %v267
        %v273 = vunpack.c.l.b16 %v249
        %v274 = vunpack.c.l.b16 %v250
        %v275 = vpack.c.b16 %v274, %v273
        %v284 = vunpack.c.l.b16 %v251
        %v285 = vunpack.c.h.b16 %v251
        %v286 = vunpack.c.l.b16 %v252
        %v287 = vunpack.c.h.b16 %v252
        %v288 = vunpack.c.l.b16 %v253
        %v289 = vunpack.c.h.b16 %v253
        %v290 = vunpack.c.l.b16 %v254
        %v291 = vunpack.c.h.b16 %v254
        %v292 = vunpack.c.l.b16 %v255
        %v293 = vunpack.c.h.b16 %v255
        %v294 = vunpack.c.l.b16 %v256
        %v295 = vunpack.c.h.b16 %v256
        %v296 = vunpack.c.l.b16 %v257
        %v297 = vunpack.c.h.b16 %v257
        %v298 = vunpack.c.l.b16 %v258
        %v299 = vunpack.c.h.b16 %v258
        %v300 = vpack.c.b16 %v286, %v284
        %v301 = vpack.c.b16 %v287, %v285
        %v302 = vpack.c.b16 %v290, %v288
        %v303 = vpack.c.b16 %v291, %v289
        %v304 = vpack.c.b16 %v294, %v292
        %v305 = vpack.c.b16 %v295, %v293
        %v306 = vpack.c.b16 %v298, %v296
        %v307 = vpack.c.b16 %v299, %v297
        %vm316 = vcmask 523264
        %v318 = vsel %vm316, %v275, 0
        %320 = vmatprep.subr.bf16.mxu0 %v301
        %321 = vmatpush1.bf16.msra.mxu0 %v300
        %322 = vmatprep.subr.bf16.mxu0 %v303
        %323 = vmatpush1.bf16.msra.mxu0 %v302
        %324 = vmatprep.subr.bf16.mxu0 %v305
        %325 = vmatpush1.bf16.msra.mxu0 %v304
        %326 = vmatprep.subr.bf16.mxu0 %v307
        %327 = vmatpush1.bf16.msra.mxu0 %v306
        %328 = vmatprep.subr.bf16.mxu0 0
        %329 = vmatpush1.bf16.msra.mxu0 0
        %330 = vmatprep.subr.bf16.mxu0 0
        %331 = vmatpush1.bf16.msra.mxu0 0
        %332 = vmatprep.subr.bf16.mxu0 0
        %333 = vmatpush1.bf16.msra.mxu0 0
        %334 = vmatprep.subr.bf16.mxu0 0
        %335 = vmatpush1.bf16.msra.mxu0 0
        %336 = vmatprep.subr.bf16.mxu0 0
        %337 = vmatpush1.bf16.msra.mxu0 0
        %338 = vmatprep.subr.bf16.mxu0 0
        %339 = vmatpush1.bf16.msra.mxu0 0
        %340 = vmatprep.subr.bf16.mxu0 0
        %341 = vmatpush1.bf16.msra.mxu0 0
        %342 = vmatprep.subr.bf16.mxu0 0
        %343 = vmatpush1.bf16.msra.mxu0 0
        %344 = vmatprep.subr.bf16.mxu0 0
        %345 = vmatpush1.bf16.msra.mxu0 0
        %346 = vmatprep.subr.bf16.mxu0 0
        %347 = vmatpush1.bf16.msra.mxu0 0
        %348 = vmatprep.subr.bf16.mxu0 0
        %349 = vmatpush1.bf16.msra.mxu0 0
        %350 = vmatprep.subr.bf16.mxu0 0
        %351 = vmatpush1.bf16.msra.mxu0 0
        %352 = vmatprep.mubr.bf16.mxu0 0
        %353 = vmatmul.mubr.bf16.gmra.mrb[0].mxu0 %v318
        %v354 = vpop.f32.mrb[0].mxu0
        %v355 = vadd.f32 %v264, %v354
        %v356 = vpop.f32.mrb[0].mxu0
        %v357 = vadd.f32 %v268, %v356
        %v358 = vpop.f32.mrb[0].mxu0
        %v359 = vadd.f32 %v264, %v358
        %v360 = vpop.f32.mrb[0].mxu0
        %v361 = vadd.f32 %v268, %v360
        %362 = vdwg.mxu0
        %s363 = smul.u32 %s24, 256
        %v364 = vpack.c.bf16 %v359, %v355
        %v365 = vpack.c.bf16 %v361, %v357
        %v368 = vunpack.c.l.b16 %v364
        %v369 = vunpack.c.l.b16 %v365
        %v370 = vunpack.c.h.b16 %v364
        %v371 = vunpack.c.h.b16 %v365
        %v372 = vpack.c.b16 %v369, %v368
        %v373 = vpack.c.b16 %v371, %v370
        %s376 = sshra.s32 %s363, 7
        %s377 = sand.u32 %s363, 127
        %s378 = smul.addr %s376, 4
        %s379 = scalar_lea.vmem [#allocation9], %s378
        %380 = vst [vmem:[%s379] sm:$0xff] %v372
        %381 = vst [vmem:[%s379 + $0x10] sm:$0xff] %v373
        %v382 = vld [vmem:[#allocation2] sm:$0xff]
        %v383 = vld [vmem:[#allocation2 + $0x8] sm:$0xff]
        %v384 = vmax.f32 %v355, %v357
        %385 = vmax.xlane.f32.xlu0 %v384
        %v386 = vpop.xlane.xlu0 %385
        %v387 = vmax.f32 %v359, %v361
        %388 = vmax.xlane.f32.xlu0 %v387
        %v389 = vpop.xlane.xlu0 %388
        %v390 = vmax.f32 %v382, %v386
        %v391 = vmax.f32 %v383, %v389
        %v392 = vld [vmem:[#allocation3] sm:$0xff]
        %v393 = vld [vmem:[#allocation3 + $0x8] sm:$0xff]
        %v394 = vsub.f32 %v382, %v390
        %v395 = vsub.f32 %v383, %v391
        %v396 = vmul.f32 %v394, 1.442695
        %v397 = vpow.pop %v396
        %v398 = vmul.f32 %v395, 1.442695
        %v399 = vpow.pop %v398
        %v400 = vmul.f32 %v392, %v397
        %v401 = vmul.f32 %v393, %v399
        %403 = vset.pattern.permute.xlu0 0
        %404 = vperm.xlu0 %403, %v390
        %v405 = vpop.permute.xlu0 %404
        %408 = vset.pattern.permute.xlu0 0
        %409 = vperm.xlu0 %408, %v391
        %v410 = vpop.permute.xlu0 %409
        %v412 = vsub.f32 %v355, %v405
        %v413 = vsub.f32 %v357, %v405
        %v414 = vsub.f32 %v359, %v410
        %v415 = vsub.f32 %v361, %v410
        %v416 = vmul.f32 %v412, 1.442695
        %v417 = vpow.pop %v416
        %v418 = vmul.f32 %v413, 1.442695
        %v419 = vpow.pop %v418
        %v420 = vmul.f32 %v414, 1.442695
        %v421 = vpow.pop %v420
        %v422 = vmul.f32 %v415, 1.442695
        %v423 = vpow.pop %v422
        %v424 = vadd.f32 %v417, %v419
        %425 = vadd.xlane.f32.xlu0 %v424
        %v426 = vpop.xlane.xlu0 %425
        %v427 = vadd.f32 %v421, %v423
        %428 = vadd.xlane.f32.xlu0 %v427
        %v429 = vpop.xlane.xlu0 %428
        %v430 = vadd.f32 %v400, %v426
        %v431 = vadd.f32 %v401, %v429
        %vm432 = vcmask 7168
        %433 = vst.msk [vmem:[#allocation3] sm:$0xff] %vm432, %v430
        %434 = vst.msk [vmem:[#allocation3 + $0x8] sm:$0xff] %vm432, %v431
        %435 = vst.msk [vmem:[#allocation2] sm:$0xff] %vm432, %v390
        %436 = vst.msk [vmem:[#allocation2 + $0x8] sm:$0xff] %vm432, %v391
        %p437 = scmp.eq.s32.totalorder %s24, 1
        // Predicated region
        $region45: #{tpu_custom_call.1} parent=31 // pred_check
          %p438 = pneg %p437
        $region46: #{tpu_custom_call.1} parent=31 // pred_check_branch
          %440 = sbr.rel (%p438) target = $region48
        $region47: #{tpu_custom_call.1} parent=31 // pred_region
          %v441 = vld [vmem:[#allocation2] sm:$0xff]
          %v442 = vld [vmem:[#allocation2 + $0x8] sm:$0xff]
          %v443 = vld [vmem:[#allocation3] sm:$0xff]
          %v444 = vld [vmem:[#allocation3 + $0x8] sm:$0xff]
          %v445 = vlog2.pop %v443
          %v446 = vmul.f32 %v445, 0.6931472
          %v447 = vlog2.pop %v444
          %v448 = vmul.f32 %v447, 0.6931472
          %v449 = vadd.f32 %v441, %v446
          %v450 = vadd.f32 %v442, %v448
          %v451 = vld [vmem:[#allocation9] sm:$0xff]
          %v452 = vld [vmem:[#allocation9 + $0x8] sm:$0xff]
          %v453 = vld [vmem:[#allocation9 + $0x10] sm:$0xff]
          %v454 = vld [vmem:[#allocation9 + $0x18] sm:$0xff]
          %v455 = vunpack.c.l.bf16 %v451
          %v456 = vunpack.c.h.bf16 %v451
          %v457 = vunpack.c.l.bf16 %v452
          %v458 = vunpack.c.h.bf16 %v452
          %v459 = vunpack.c.l.bf16 %v453
          %v460 = vunpack.c.h.bf16 %v453
          %v461 = vunpack.c.l.bf16 %v454
          %v462 = vunpack.c.h.bf16 %v454
          %464 = vset.pattern.permute.xlu0 0
          %465 = vperm.xlu0 %464, %v449
          %v466 = vpop.permute.xlu0 %465
          %469 = vset.pattern.permute.xlu0 0
          %470 = vperm.xlu0 %469, %v450
          %v471 = vpop.permute.xlu0 %470
          %v473 = vsub.f32 %v455, %v466
          %v474 = vsub.f32 %v456, %v466
          %v475 = vsub.f32 %v457, %v466
          %v476 = vsub.f32 %v458, %v466
          %v477 = vsub.f32 %v459, %v471
          %v478 = vsub.f32 %v460, %v471
          %v479 = vsub.f32 %v461, %v471
          %v480 = vsub.f32 %v462, %v471
          %v481 = vpack.c.bf16 %v477, %v473
          %v482 = vpack.c.bf16 %v478, %v474
          %v483 = vpack.c.bf16 %v479, %v475
          %v484 = vpack.c.bf16 %v480, %v476
          %v489 = vunpack.c.l.b16 %v481
          %v490 = vunpack.c.l.b16 %v482
          %v491 = vunpack.c.l.b16 %v483
          %v492 = vunpack.c.l.b16 %v484
          %v493 = vunpack.c.h.b16 %v481
          %v494 = vunpack.c.h.b16 %v482
          %v495 = vunpack.c.h.b16 %v483
          %v496 = vunpack.c.h.b16 %v484
          %v497 = vpack.c.b16 %v490, %v489
          %v498 = vpack.c.b16 %v492, %v491
          %v499 = vpack.c.b16 %v494, %v493
          %v500 = vpack.c.b16 %v496, %v495
          %505 = vst [vmem:[#allocation9] sm:$0xff] %v497
          %506 = vst [vmem:[#allocation9 + $0x8] sm:$0xff] %v498
          %507 = vst [vmem:[#allocation9 + $0x10] sm:$0xff] %v499
          %508 = vst [vmem:[#allocation9 + $0x18] sm:$0xff] %v500
        $region48: #{tpu_custom_call.1} parent=31 // pred_fallthru
          _
        // Predicated region
        $region49: #{tpu_custom_call.1} parent=31 // pred_check
          %p509 = pneg %p127
        $region50: #{tpu_custom_call.1} parent=31 // pred_check_branch
          %511 = sbr.rel (%p509) target = $region52
        $region51: #{tpu_custom_call.1} parent=31 // pred_region
          %s512 = smul.u32 2, %s23
          %s514 = ssub.s32 512, 512
          %515 = vsyncadd [#allocation6], %s514
          %s516 = smul.addr %s512, 4
          %s517 = smul.addr %s516, 64
          %s518 = scalar_lea.hbm %s3, %s517
          %s519 = sshll.u32 [#allocation9], 4
          %s520 = int_to_ptr.vmem [resolvable:$true] %s519
          %525 = dma.vmem_to_hbm [thread:$0]  %s520, 512, %s518, [#allocation6], 256, 256, 16
        $region52: #{tpu_custom_call.1} parent=31 // pred_fallthru
          _
        // Predicated region
        $region53: #{tpu_custom_call.1} parent=31 // pred_check
          %p526 = pneg %p127
        $region54: #{tpu_custom_call.1} parent=31 // pred_check_branch
          %528 = sbr.rel (%p526) target = $region56
        $region55: #{tpu_custom_call.1} parent=31 // pred_region
          %529 = dma.done [#allocation6], 512
        $region56: #{tpu_custom_call.1} parent=31 // pred_fallthru
          _
      $region32: #{tpu_custom_call.1} parent=5 // pred_fallthru
        _
      %p530 = scmp.le.s32.totalorder 2, %s14
      // Predicated region
      $region57: #{tpu_custom_call.1} parent=5 // pred_check
        %p531 = pneg %p530
      $region58: #{tpu_custom_call.1} parent=5 // pred_check_branch
        %533 = sbr.rel (%p531) target = $region60
      $region59: #{tpu_custom_call.1} parent=5 // pred_region
        %s534 = ssub.s32 %s14, 2
      $region60: #{tpu_custom_call.1} parent=5 // pred_fallthru
        _
    $region6: #{tpu_custom_call.1} parent=1 // loop_footer
      %s18 = sadd.s32 1, %s14
    $region7: #{tpu_custom_call.1} parent=1 // loop_footer_branch
      %13 = sbr.rel target = $region3
    $region8: #{tpu_custom_call.1} parent=1 // loop_exit
      _
    %535 = vsyncpa [#allocation5], 1
    %s536 = scalar_lea.sflag [#allocation5], 1
    %537 = vsyncpa %s536, 1
    %538 = vsyncpa [#allocation8], 1
    %s539 = scalar_lea.sflag [#allocation8], 1
    %540 = vsyncpa %s539, 1
    %541 = vsyncpa [#allocation6], 1
    %s542 = scalar_lea.sflag [#allocation6], 1
    %543 = vsyncpa %s542, 1

</llo_original>
